<compile_context>
chip_gen: v5e
topology: v5e:2x2
jax: 0.10.0
libtpu: 0.0.40
codegen_flags: <defaults>
</compile_context>

<pallas_src>
import functools

import jax
import jax.numpy as jnp
from jax.experimental import pallas as pl
from jax.experimental.pallas import tpu as pltpu


# ----------------------------------------------------------------------------
# Stage 1: fused Q/K/V projection (folded conv+BN affines), once per pixel.
# ----------------------------------------------------------------------------
def _qkv_proj_kernel(x_ref,      # (1, Cin, TP)   bf16 input tile
                     wqkv_ref,   # (Ckp+Ckp+Cvp, Cin) bf16  fused [q|k|v] weight
                     bqkv_ref,   # (Ckp+Ckp+Cvp, 1)   f32   fused bias
                     q_ref,      # (1, Ckp, TP)  bf16 out  (scale already folded)
                     kt_ref,     # (1, TP, Ckp)  bf16 out  (K stored transposed)
                     v_ref,      # (1, Cvp, TP)  bf16 out
                     *, ckp):
    x = x_ref[0]                                                       # (Cin, TP) bf16
    qkv = (jnp.dot(wqkv_ref[...], x, preferred_element_type=jnp.float32)
           + bqkv_ref[...])                                            # (Ctot, TP) f32
    q_ref[0] = qkv[:ckp].astype(q_ref.dtype)
    # One transpose per pixel tile (outside the O(HW^2) loop) so the flash
    # kernel's per-step score matmul is in natural (M,K)x(K,N) orientation.
    kt_ref[0] = qkv[ckp:2 * ckp].T.astype(kt_ref.dtype)
    v_ref[0] = qkv[2 * ckp:].astype(v_ref.dtype)


# ----------------------------------------------------------------------------
# Stage 2: flash-attention core + fused final 1x1 conv W.
# ----------------------------------------------------------------------------
def _flash_attn_kernel(q_ref,              # (1, Ckp, TQ) bf16 (already scaled)
                       kt_ref,             # (1, TK, Ckp) bf16
                       v_ref,              # (1, Cvp, TK) bf16
                       wo_ref, bo_ref,     # (Cout, Cvp) bf16, (Cout, 1) f32
                       o_ref,              # (1, Cout, TQ)
                       m_sc, l_sc,         # VMEM (1, TQ) f32 each
                       acc_sc):            # VMEM (Cvp, TQ) f32
    kv_idx = pl.program_id(2)

    @pl.when(kv_idx == 0)
    def _init():
        m_sc[...] = jnp.full_like(m_sc, -jnp.inf)
        l_sc[...] = jnp.zeros_like(l_sc)
        acc_sc[...] = jnp.zeros_like(acc_sc)

    # sim_t[j, i] = sum_c K[c, j] * Qscaled[c, i]   -> natural MXU orientation.
    sim_t = jnp.dot(kt_ref[0], q_ref[0],
                    preferred_element_type=jnp.float32)                # (TK, TQ)

    # Online softmax over the kv (sublane) axis.
    m_prev = m_sc[...]                                                 # (1, TQ)
    m_new = jnp.maximum(m_prev, jnp.max(sim_t, axis=0, keepdims=True))
    alpha = jnp.exp(m_prev - m_new)                                    # (1, TQ)
    p_t = jnp.exp(sim_t - m_new)                                       # (TK, TQ) f32
    l_sc[...] = alpha * l_sc[...] + jnp.sum(p_t, axis=0, keepdims=True)
    acc_sc[...] = alpha * acc_sc[...] + jnp.dot(
        v_ref[0], p_t.astype(jnp.bfloat16),
        preferred_element_type=jnp.float32)                            # (Cvp, TQ)
    m_sc[...] = m_new

    @pl.when(kv_idx == pl.num_programs(2) - 1)
    def _finalize():
        ctx = acc_sc[...] * pl.reciprocal(l_sc[...], approx=True)      # (Cvp, TQ)
        out = (jnp.dot(wo_ref[...], ctx.astype(jnp.bfloat16),
                       preferred_element_type=jnp.float32)
               + bo_ref[...])                                          # (Cout, TQ)
        o_ref[0] = out.astype(o_ref.dtype)


# ----------------------------------------------------------------------------
# Parameter construction / folding (plain-JAX glue).
# ----------------------------------------------------------------------------
def _fold_conv_bn_chain(w1, b1, bn1, w2, b2, bn2, eps=1e-5):
    """Fold conv1x1 -> BN -> conv1x1 -> BN (eval mode) into one (Cout, Cin) affine."""
    g1, be1, m1, v1 = bn1
    g2, be2, m2, v2 = bn2
    s1 = g1 / jnp.sqrt(v1 + eps)
    s2 = g2 / jnp.sqrt(v2 + eps)
    W1e = w1 * s1[:, None]
    b1e = s1 * (b1 - m1) + be1
    W2e = w2 * s2[:, None]
    b2e = s2 * (b2 - m2) + be2
    return W2e @ W1e, W2e @ b1e + b2e


def make_params(key, in_channels, key_channels, value_channels, out_channels,
                dtype=jnp.float32):
    ks = jax.random.split(key, 16)

    def rnd(k, shape, scale=0.1):
        return (scale * jax.random.normal(k, shape)).astype(dtype)

    def bn(k, c):
        k1, k2 = jax.random.split(k)
        gamma = 1.0 + 0.05 * jax.random.normal(k1, (c,))
        beta = 0.05 * jax.random.normal(k2, (c,))
        return (gamma.astype(dtype), beta.astype(dtype),
                jnp.zeros((c,), dtype), jnp.ones((c,), dtype))

    q_w1, q_b1 = rnd(ks[0], (key_channels, in_channels)), rnd(ks[1], (key_channels,))
    q_bn1 = bn(ks[2], key_channels)
    q_w2, q_b2 = rnd(ks[3], (key_channels, key_channels)), rnd(ks[4], (key_channels,))
    q_bn2 = bn(ks[5], key_channels)
    k_w1, k_b1 = rnd(ks[6], (key_channels, in_channels)), rnd(ks[7], (key_channels,))
    k_bn1 = bn(ks[8], key_channels)
    k_w2, k_b2 = rnd(ks[9], (key_channels, key_channels)), rnd(ks[10], (key_channels,))
    k_bn2 = bn(ks[11], key_channels)
    v_w, v_b = rnd(ks[12], (value_channels, in_channels)), rnd(ks[13], (value_channels,))
    w_w, w_b = rnd(ks[14], (out_channels, value_channels)), rnd(ks[15], (out_channels,))

    wq, bq = _fold_conv_bn_chain(q_w1, q_b1, q_bn1, q_w2, q_b2, q_bn2)
    wk, bk = _fold_conv_bn_chain(k_w1, k_b1, k_bn1, k_w2, k_b2, k_bn2)
    return dict(wq=wq, bq=bq, wk=wk, bk=bk, wv=v_w, bv=v_b, ww=w_w, bw=w_b)


def _pad_rows(w, b, mult=8):
    """Zero-pad output-channel rows to a multiple of `mult` (mathematical no-op)."""
    c = w.shape[0]
    cp = -(-c // mult) * mult
    if cp != c:
        w = jnp.pad(w, ((0, cp - c), (0, 0)))
        b = jnp.pad(b, (0, cp - c))
    return w, b, cp


def _pick_tile(hw, pref):
    """Largest tile <= pref that divides hw and is a multiple of 128 (or hw)."""
    t = min(pref, hw)
    while t >= 128 and (hw % t != 0 or t % 128 != 0):
        t -= 128
    if t < 128 or hw % t != 0:
        # TODO(synk): ragged HW (not a multiple of 128) falls back to one tile.
        t = hw
    return t


def _default_vmem_limit():
    """Half of physical VMEM, capped at 64 MiB (v5e/v6e: 64 MiB, v7x: 32 MiB)."""
    try:
        cap = getattr(pltpu.get_tpu_info(), "vmem_capacity_bytes", None)
        if cap:
            return int(min(cap // 2, 64 * 1024 * 1024))
    except Exception:
        pass
    return 32 * 1024 * 1024


# ----------------------------------------------------------------------------
# Wrapper calling the two pallas_calls.
# ----------------------------------------------------------------------------
def self_attention_block(x, params, key_channels, *, tq=256, tk=512, tp=512):
    """x: (N, Cin, H, W) NCHW (scale=1).  Returns (N, Cout, H, W)."""
    N, Cin, H, W = x.shape
    HW = H * W
    Cout = params["ww"].shape[0]
    out_dtype = x.dtype

    tq = _pick_tile(HW, tq)
    if N * (HW // tq) < 2:                 # keep both v7x TensorCores fed
        tq = _pick_tile(HW, max(128, tq // 2))
    tk = _pick_tile(HW, tk)
    tp = _pick_tile(HW, tp)
    n_q, n_kv = HW // tq, HW // tk
    vmem_limit = _default_vmem_limit()

    # Channels-first, lane-dense HW; bf16 halves projection-input DMA.
    x_bf = x.reshape(N, Cin, HW).astype(jnp.bfloat16)

    # Fold softmax scale into the query affine; pad channel dims to sublanes.
    scale = key_channels ** -0.5
    wq_p, bq_p, ck_p = _pad_rows(params["wq"] * scale, params["bq"] * scale)
    wk_p, bk_p, _ = _pad_rows(params["wk"], params["bk"])
    wv_p, bv_p, cv_p = _pad_rows(params["wv"], params["bv"])

    wqkv = jnp.concatenate([wq_p, wk_p, wv_p], axis=0).astype(jnp.bfloat16)
    bqkv = jnp.concatenate([bq_p, bk_p, bv_p], axis=0).reshape(-1, 1).astype(jnp.float32)
    wo = jnp.pad(params["ww"],
                 ((0, 0), (0, cv_p - params["ww"].shape[1]))).astype(jnp.bfloat16)
    bo = params["bw"].reshape(Cout, 1).astype(jnp.float32)

    const = lambda a, nargs: pl.BlockSpec(a.shape, (lambda *idx: (0, 0)))

    # --- Stage 1: Q / K^T / V projection (once per pixel). ------------------
    q_all, kt_all, v_all = pl.pallas_call(
        functools.partial(_qkv_proj_kernel, ckp=ck_p),
        out_shape=(
            jax.ShapeDtypeStruct((N, ck_p, HW), jnp.bfloat16),
            jax.ShapeDtypeStruct((N, HW, ck_p), jnp.bfloat16),
            jax.ShapeDtypeStruct((N, cv_p, HW), jnp.bfloat16),
        ),
        grid_spec=pltpu.PrefetchScalarGridSpec(
            num_scalar_prefetch=0,
            grid=(N, HW // tp),
            in_specs=[
                pl.BlockSpec((1, Cin, tp), lambda n, i: (n, 0, i)),
                const(wqkv, 2),
                const(bqkv, 2),
            ],
            out_specs=[
                pl.BlockSpec((1, ck_p, tp), lambda n, i: (n, 0, i)),
                pl.BlockSpec((1, tp, ck_p), lambda n, i: (n, i, 0)),
                pl.BlockSpec((1, cv_p, tp), lambda n, i: (n, 0, i)),
            ],
        ),
        compiler_params=pltpu.CompilerParams(
            dimension_semantics=("parallel", "parallel"),
            vmem_limit_bytes=vmem_limit),
    )(x_bf, wqkv, bqkv)

    # --- Stage 2: flash attention + final 1x1 conv W. -----------------------
    out = pl.pallas_call(
        _flash_attn_kernel,
        out_shape=jax.ShapeDtypeStruct((N, Cout, HW), out_dtype),
        grid_spec=pltpu.PrefetchScalarGridSpec(
            num_scalar_prefetch=0,
            grid=(N, n_q, n_kv),
            in_specs=[
                pl.BlockSpec((1, ck_p, tq), lambda n, qi, kv: (n, 0, qi)),  # Q
                pl.BlockSpec((1, tk, ck_p), lambda n, qi, kv: (n, kv, 0)),  # K^T
                pl.BlockSpec((1, cv_p, tk), lambda n, qi, kv: (n, 0, kv)),  # V
                const(wo, 3),
                const(bo, 3),
            ],
            out_specs=pl.BlockSpec((1, Cout, tq), lambda n, qi, kv: (n, 0, qi)),
            scratch_shapes=[
                pltpu.VMEM((1, tq), jnp.float32),      # running max m
                pltpu.VMEM((1, tq), jnp.float32),      # running sum l
                pltpu.VMEM((cv_p, tq), jnp.float32),   # output accumulator
            ],
        ),
        compiler_params=pltpu.CompilerParams(
            dimension_semantics=("parallel", "parallel", "arbitrary"),
            vmem_limit_bytes=vmem_limit),
    )(q_all, kt_all, v_all, wo, bo)

    return out.reshape(N, Cout, H, W)


# ----------------------------------------------------------------------------
# Pure-JAX reference (mirrors the PyTorch forward) for verification.
# ----------------------------------------------------------------------------
def reference(x, params, key_channels):
    N, Cin, H, W = x.shape
    HW = H * W
    xt = x.reshape(N, Cin, HW)
    q = jnp.einsum("oc,ncl->nol", params["wq"], xt) + params["bq"][None, :, None]
    k = jnp.einsum("oc,ncl->nol", params["wk"], xt) + params["bk"][None, :, None]
    v = jnp.einsum("oc,ncl->nol", params["wv"], xt) + params["bv"][None, :, None]
    sim = (key_channels ** -0.5) * jnp.einsum("nci,ncj->nij", q, k)
    p = jax.nn.softmax(sim, axis=-1)
    ctx = jnp.einsum("nij,ncj->nci", p, v)
    out = jnp.einsum("oc,ncl->nol", params["ww"], ctx) + params["bw"][None, :, None]
    return out.reshape(N, -1, H, W)


if __name__ == "__main__":
    key = jax.random.PRNGKey(0)
    k_x, k_p = jax.random.split(key)

    N, Cin, H, W = 2, 8, 16, 16
    Ck, Cv = 4, 4
    Cout = Cin  # out_channels defaults to in_channels

    x = jax.random.normal(k_x, (N, Cin, H, W), dtype=jnp.float32)
    params = make_params(k_p, Cin, Ck, Cv, Cout)

    # Small tiles so the multi-tile online-softmax path (grid = (2, 2, 2))
    # is actually exercised at this toy HW=256.
    y = self_attention_block(x, params, key_channels=Ck, tq=128, tk=128, tp=128)
    y = jax.block_until_ready(y)

    y_ref = reference(x, params, key_channels=Ck)
    assert y.shape == (N, Cout, H, W)
    err = float(jnp.max(jnp.abs(y - y_ref)))
    scale = float(jnp.max(jnp.abs(y_ref)))
    # bf16 x / Q / K / V / MXU inputs + approx reciprocal => loose tolerance.
    assert err <= 3e-2 * scale + 1e-3, f"mismatch vs reference: err={err}, scale={scale}"

    print("KERNEL_OK")
</pallas_src>

<mosaic_0001>
module attributes {stable_mosaic.version = 11 : i64} {
  func.func @_qkv_proj_kernel(%arg0: i32, %arg1: i32, %arg2: memref<1x8x128xbf16, #tpu.memory_space<vmem>>, %arg3: memref<24x8xbf16, #tpu.memory_space<vmem>>, %arg4: memref<24x1xf32, #tpu.memory_space<vmem>>, %arg5: memref<1x8x128xbf16, #tpu.memory_space<vmem>>, %arg6: memref<1x128x8xbf16, #tpu.memory_space<vmem>>, %arg7: memref<1x8x128xbf16, #tpu.memory_space<vmem>>) attributes {dimension_semantics = [#tpu.dimension_semantics<parallel>, #tpu.dimension_semantics<parallel>], iteration_bounds = array<i64: 2, 2>, scalar_prefetch = 0 : i64, scratch_operands = 0 : i64, tpu.core_type = #tpu.core_type<tc>, window_params = [{transform_indices = @transform_0, window_bounds = array<i64: 1, 8, 128>}, {pipeline_mode = #tpu.pipeline_mode<synchronous>, transform_indices = @transform_1, window_bounds = array<i64: 24, 8>}, {pipeline_mode = #tpu.pipeline_mode<synchronous>, transform_indices = @transform_2, window_bounds = array<i64: 24, 1>}, {transform_indices = @transform_3, window_bounds = array<i64: 1, 8, 128>}, {transform_indices = @transform_4, window_bounds = array<i64: 1, 128, 8>}, {transform_indices = @transform_5, window_bounds = array<i64: 1, 8, 128>}]} {
    %c0 = arith.constant 0 : index
    %c0_0 = arith.constant 0 : index
    %c0_1 = arith.constant 0 : index
    %0 = vector.load %arg2[%c0, %c0_0, %c0_1] : memref<1x8x128xbf16, #tpu.memory_space<vmem>>, vector<1x8x128xbf16>
    %1 = vector.shape_cast %0 : vector<1x8x128xbf16> to vector<8x128xbf16>
    %c0_2 = arith.constant 0 : index
    %c0_3 = arith.constant 0 : index
    %2 = vector.load %arg3[%c0_2, %c0_3] : memref<24x8xbf16, #tpu.memory_space<vmem>>, vector<24x8xbf16>
    %cst = arith.constant dense<0.000000e+00> : vector<24x128xf32>
    %3 = tpu.matmul %2, %1, %cst {dimension_numbers = #tpu.dot_dimension_numbers<[1], [0], [0], [1], [0, 0, 1, 1], [], []>} : vector<24x8xbf16>, vector<8x128xbf16>, vector<24x128xf32> -> vector<24x128xf32>
    %c0_4 = arith.constant 0 : index
    %c0_5 = arith.constant 0 : index
    %4 = vector.load %arg4[%c0_4, %c0_5] : memref<24x1xf32, #tpu.memory_space<vmem>>, vector<24x1xf32>
    %5 = vector.broadcast %4 : vector<24x1xf32> to vector<24x128xf32>
    %6 = arith.addf %3, %5 : vector<24x128xf32>
    %7 = vector.extract_strided_slice %6 {offsets = [0, 0], sizes = [8, 128], strides = [1, 1]} : vector<24x128xf32> to vector<8x128xf32>
    %8 = arith.truncf %7 : vector<8x128xf32> to vector<8x128xbf16>
    %c0_6 = arith.constant 0 : index
    %c0_7 = arith.constant 0 : index
    %c0_8 = arith.constant 0 : index
    %9 = vector.load %arg5[%c0_6, %c0_7, %c0_8] : memref<1x8x128xbf16, #tpu.memory_space<vmem>>, vector<1x8x128xbf16>
    %10 = vector.shape_cast %9 : vector<1x8x128xbf16> to vector<8x128xbf16>
    %11 = vector.shape_cast %8 : vector<8x128xbf16> to vector<1x8x128xbf16>
    tpu.vector_store %arg5[%c0_6, %c0_7, %c0_8], %11 {strides = array<i32>} : memref<1x8x128xbf16, #tpu.memory_space<vmem>>, vector<1x8x128xbf16>,
    %12 = vector.extract_strided_slice %6 {offsets = [8, 0], sizes = [8, 128], strides = [1, 1]} : vector<24x128xf32> to vector<8x128xf32>
    %13 = tpu.transpose %12, [1, 0] : vector<8x128xf32> -> vector<128x8xf32>
    %14 = arith.truncf %13 : vector<128x8xf32> to vector<128x8xbf16>
    %c0_9 = arith.constant 0 : index
    %c0_10 = arith.constant 0 : index
    %c0_11 = arith.constant 0 : index
    %15 = vector.load %arg6[%c0_9, %c0_10, %c0_11] : memref<1x128x8xbf16, #tpu.memory_space<vmem>>, vector<1x128x8xbf16>
    %16 = vector.shape_cast %15 : vector<1x128x8xbf16> to vector<128x8xbf16>
    %17 = vector.shape_cast %14 : vector<128x8xbf16> to vector<1x128x8xbf16>
    tpu.vector_store %arg6[%c0_9, %c0_10, %c0_11], %17 {strides = array<i32>} : memref<1x128x8xbf16, #tpu.memory_space<vmem>>, vector<1x128x8xbf16>,
    %18 = vector.extract_strided_slice %6 {offsets = [16, 0], sizes = [8, 128], strides = [1, 1]} : vector<24x128xf32> to vector<8x128xf32>
    %19 = arith.truncf %18 : vector<8x128xf32> to vector<8x128xbf16>
    %c0_12 = arith.constant 0 : index
    %c0_13 = arith.constant 0 : index
    %c0_14 = arith.constant 0 : index
    %20 = vector.load %arg7[%c0_12, %c0_13, %c0_14] : memref<1x8x128xbf16, #tpu.memory_space<vmem>>, vector<1x8x128xbf16>
    %21 = vector.shape_cast %20 : vector<1x8x128xbf16> to vector<8x128xbf16>
    %22 = vector.shape_cast %19 : vector<8x128xbf16> to vector<1x8x128xbf16>
    tpu.vector_store %arg7[%c0_12, %c0_13, %c0_14], %22 {strides = array<i32>} : memref<1x8x128xbf16, #tpu.memory_space<vmem>>, vector<1x8x128xbf16>,
    return
  }
  func.func @transform_0(%arg0: i32, %arg1: i32) -> (i32, i32, i32) {
    %c0_i32 = arith.constant 0 : i32
    %c0_i32_0 = arith.constant 0 : i32
    return %arg0, %c0_i32, %arg1 : i32, i32, i32
  }
  func.func @transform_1(%arg0: i32, %arg1: i32) -> (i32, i32) {
    %c0_i32 = arith.constant 0 : i32
    %c0_i32_0 = arith.constant 0 : i32
    %c0_i32_1 = arith.constant 0 : i32
    return %c0_i32, %c0_i32_0 : i32, i32
  }
  func.func @transform_2(%arg0: i32, %arg1: i32) -> (i32, i32) {
    %c0_i32 = arith.constant 0 : i32
    %c0_i32_0 = arith.constant 0 : i32
    %c0_i32_1 = arith.constant 0 : i32
    return %c0_i32, %c0_i32_0 : i32, i32
  }
  func.func @transform_3(%arg0: i32, %arg1: i32) -> (i32, i32, i32) {
    %c0_i32 = arith.constant 0 : i32
    %c0_i32_0 = arith.constant 0 : i32
    return %arg0, %c0_i32, %arg1 : i32, i32, i32
  }
  func.func @transform_4(%arg0: i32, %arg1: i32) -> (i32, i32, i32) {
    %c0_i32 = arith.constant 0 : i32
    %c0_i32_0 = arith.constant 0 : i32
    return %arg0, %arg1, %c0_i32 : i32, i32, i32
  }
  func.func @transform_5(%arg0: i32, %arg1: i32) -> (i32, i32, i32) {
    %c0_i32 = arith.constant 0 : i32
    %c0_i32_0 = arith.constant 0 : i32
    return %arg0, %c0_i32, %arg1 : i32, i32, i32
  }
}

</mosaic_0001>

<llo_original>
// kernel: tpu_custom_call.1
$region0: #{tpu_custom_call.1}
  #allocation0 [shape = 'u32[]', space=smem, size = 0x4, offset = 0x4, fixed_abs, tag = 'smem constant byte address 0x4 - core index']
  #allocation1 [shape = 'u32[72,128]{1,0:T(1,128)}', space=vmem, size = 0x9000, scoped, tag = 'internal scratch']
  %s0 = inlined_call_operand.vmem [shape: bf16[2,8,256], index: 0, kind: input, shape index: {}]
  %s1 = inlined_call_operand.vmem [shape: bf16[24,8], index: 1, kind: input, shape index: {}]
  %s2 = inlined_call_operand.vmem [shape: f32[24,1], index: 2, kind: input, shape index: {}]
  %s3 = inlined_call_operand.hbm [shape: bf16[2,8,256], index: 3, kind: output, shape index: {0}]
  %s4 = inlined_call_operand.vmem [shape: bf16[2,256,8], index: 4, kind: output, shape index: {1}]
  %s5 = inlined_call_operand.hbm [shape: bf16[2,8,256], index: 5, kind: output, shape index: {2}]
  %6 = xla_tuple %s3, %s4, %s5
  %s7 = sld [smem:[#allocation0]]
  $region61: #{tpu_custom_call.1} parent=0
    _
  %s9 = ssub.s32 1, %s7
  %s10 = scalar_select 0, %s9, %s7
  $region1: #{tpu_custom_call.1} parent=0
    #allocation2 [shape = 'u8[4096]{0}', space=vmem, size = 0x1000, scoped, tag = 'output window, operand 0']
    #allocation3 [shape = 's32[2]{0}', space=sflag, size = 0x8, scoped, tag = 'scoped memory for tpu_custom_call.1']
    #allocation4 [shape = 'u8[4096]{0}', space=vmem, size = 0x1000, scoped, tag = 'output window, operand 2']
    #allocation5 [shape = 's32[2]{0}', space=sflag, size = 0x8, scoped, tag = 'scoped memory for tpu_custom_call.1']
    %11 = vsyncpa [#allocation3], 0
    %s12 = scalar_lea.sflag [#allocation3], 1
    %13 = vsyncpa %s12, 0
    %14 = vsyncpa [#allocation5], 0
    %s15 = scalar_lea.sflag [#allocation5], 1
    %16 = vsyncpa %s15, 0
    loop: start=0, step=1, limit=6
    $region2: #{tpu_custom_call.1} parent=1 // loop_pre_header
      _
    $region3: #{tpu_custom_call.1} parent=1 // loop_header
      %s18 = sphi 0, %s22
      %p19 = scmp.ge.s32.totalorder %s18, 6
      %s25 = sphi 0, %s37
      %s26 = sphi 0, %s33
      %s27 = sphi 0, %s25
      %s28 = sphi 0, %s26
      %s29 = sphi 0, %s27
      %s30 = sphi 0, %s28
      %s42 = sphi 0, %s44
      %s45 = sphi 0, %s42
      %s46 = sphi 0, %s45
      %s62 = sphi 0, %s46
      %s66 = sphi 0, %s66
      %s68 = sphi 0, %s66
      %s69 = sphi 0, %s68
      %s83 = sphi 0, %s69
      %s87 = sphi 0, %s87
      %s89 = sphi 0, %s87
      %s90 = sphi 0, %s89
      %s104 = sphi 0, %s90
      %s112 = sphi 0, %s114
      %s115 = sphi 0, %s112
      %s116 = sphi 0, %s115
      %s132 = sphi 0, %s116
      %s140 = sphi 0, %s142
      %s143 = sphi 0, %s140
      %s144 = sphi 0, %s143
      %s160 = sphi 0, %s144
      %s168 = sphi 0, %s170
      %s171 = sphi 0, %s168
      %s172 = sphi 0, %s171
      %s188 = sphi 0, %s172
    $region4: #{tpu_custom_call.1} parent=1 // loop_header_branch
      %21 = sbr.rel (%p19) target = $region8
    $region5: #{tpu_custom_call.1} parent=1 // loop_body
      %s23 = ssub.s32 %s18, 1
      %s24 = ssub.s32 %s18, 2
      %s31 = sadd.s32 1, %s26
      %p32 = scmp.ge.s32.totalorder %s31, 2
      %s33 = scalar_select %p32, 0, %s31
      %s34 = sadd.s32 1, %s25
      %s35 = scalar_select %p32, %s34, %s25
      %p36 = scmp.ge.s32.totalorder %s35, 2
      %s37 = scalar_select %p36, 0, %s35
      %s38 = ssub.s32 %s25, %s37
      %s39 = ssub.s32 %s26, %s33
      %s40 = sor.u32 %s38, %s39
      %p41 = scmp.eq.s32.totalorder %s40, 0
      %s43 = sadd.s32 %s42, 1
      %s44 = scalar_select %p41, %s42, %s43
      %p47 = pneg %p41
      %p48 = scmp.eq.s32.totalorder %s18, 3
      %p49 = por %p47, %p48
      %p50 = scmp.ne.s32.totalorder %s42, %s45
      %p51 = scmp.eq.s32.totalorder %s18, 0
      %p52 = por %p50, %p51
      %p53 = scmp.ne.s32.totalorder %s42, %s45
      %p54 = scmp.eq.s32.totalorder %s23, 3
      %p55 = por %p53, %p54
      %p56 = scmp.ne.s32.totalorder %s45, %s46
      %p57 = scmp.eq.s32.totalorder %s23, 0
      %p58 = por %p56, %p57
      %p59 = scmp.ne.s32.totalorder %s45, %s46
      %p60 = scmp.eq.s32.totalorder %s24, 3
      %p61 = por %p59, %p60
      %p63 = scmp.ne.s32.totalorder %s46, %s62
      %p64 = scmp.eq.s32.totalorder %s24, 0
      %p65 = por %p63, %p64
      %s67 = sadd.s32 %s66, 1
      %p70 = scmp.eq.s32.totalorder %s18, 3
      %p71 = scmp.ne.s32.totalorder %s66, %s68
      %p72 = scmp.eq.s32.totalorder %s18, 0
      %p73 = por %p71, %p72
      %p74 = scmp.ne.s32.totalorder %s66, %s68
      %p75 = scmp.eq.s32.totalorder %s23, 3
      %p76 = por %p74, %p75
      %p77 = scmp.ne.s32.totalorder %s68, %s69
      %p78 = scmp.eq.s32.totalorder %s23, 0
      %p79 = por %p77, %p78
      %p80 = scmp.ne.s32.totalorder %s68, %s69
      %p81 = scmp.eq.s32.totalorder %s24, 3
      %p82 = por %p80, %p81
      %p84 = scmp.ne.s32.totalorder %s69, %s83
      %p85 = scmp.eq.s32.totalorder %s24, 0
      %p86 = por %p84, %p85
      %s88 = sadd.s32 %s87, 1
      %p91 = scmp.eq.s32.totalorder %s18, 3
      %p92 = scmp.ne.s32.totalorder %s87, %s89
      %p93 = scmp.eq.s32.totalorder %s18, 0
      %p94 = por %p92, %p93
      %p95 = scmp.ne.s32.totalorder %s87, %s89
      %p96 = scmp.eq.s32.totalorder %s23, 3
      %p97 = por %p95, %p96
      %p98 = scmp.ne.s32.totalorder %s89, %s90
      %p99 = scmp.eq.s32.totalorder %s23, 0
      %p100 = por %p98, %p99
      %p101 = scmp.ne.s32.totalorder %s89, %s90
      %p102 = scmp.eq.s32.totalorder %s24, 3
      %p103 = por %p101, %p102
      %p105 = scmp.ne.s32.totalorder %s90, %s104
      %p106 = scmp.eq.s32.totalorder %s24, 0
      %p107 = por %p105, %p106
      %s108 = ssub.s32 %s25, %s37
      %s109 = ssub.s32 %s26, %s33
      %s110 = sor.u32 %s108, %s109
      %p111 = scmp.eq.s32.totalorder %s110, 0
      %s113 = sadd.s32 %s112, 1
      %s114 = scalar_select %p111, %s112, %s113
      %p117 = pneg %p111
      %p118 = scmp.eq.s32.totalorder %s18, 3
      %p119 = por %p117, %p118
      %p120 = scmp.ne.s32.totalorder %s112, %s115
      %p121 = scmp.eq.s32.totalorder %s18, 0
      %p122 = por %p120, %p121
      %p123 = scmp.ne.s32.totalorder %s112, %s115
      %p124 = scmp.eq.s32.totalorder %s23, 3
      %p125 = por %p123, %p124
      %p126 = scmp.ne.s32.totalorder %s115, %s116
      %p127 = scmp.eq.s32.totalorder %s23, 0
      %p128 = por %p126, %p127
      %p129 = scmp.ne.s32.totalorder %s115, %s116
      %p130 = scmp.eq.s32.totalorder %s24, 3
      %p131 = por %p129, %p130
      %p133 = scmp.ne.s32.totalorder %s116, %s132
      %p134 = scmp.eq.s32.totalorder %s24, 0
      %p135 = por %p133, %p134
      %s136 = ssub.s32 %s25, %s37
      %s137 = ssub.s32 %s26, %s33
      %s138 = sor.u32 %s136, %s137
      %p139 = scmp.eq.s32.totalorder %s138, 0
      %s141 = sadd.s32 %s140, 1
      %s142 = scalar_select %p139, %s140, %s141
      %p145 = pneg %p139
      %p146 = scmp.eq.s32.totalorder %s18, 3
      %p147 = por %p145, %p146
      %p148 = scmp.ne.s32.totalorder %s140, %s143
      %p149 = scmp.eq.s32.totalorder %s18, 0
      %p150 = por %p148, %p149
      %p151 = scmp.ne.s32.totalorder %s140, %s143
      %p152 = scmp.eq.s32.totalorder %s23, 3
      %p153 = por %p151, %p152
      %p154 = scmp.ne.s32.totalorder %s143, %s144
      %p155 = scmp.eq.s32.totalorder %s23, 0
      %p156 = por %p154, %p155
      %p157 = scmp.ne.s32.totalorder %s143, %s144
      %p158 = scmp.eq.s32.totalorder %s24, 3
      %p159 = por %p157, %p158
      %p161 = scmp.ne.s32.totalorder %s144, %s160
      %p162 = scmp.eq.s32.totalorder %s24, 0
      %p163 = por %p161, %p162
      %s164 = ssub.s32 %s25, %s37
      %s165 = ssub.s32 %s26, %s33
      %s166 = sor.u32 %s164, %s165
      %p167 = scmp.eq.s32.totalorder %s166, 0
      %s169 = sadd.s32 %s168, 1
      %s170 = scalar_select %p167, %s168, %s169
      %p173 = pneg %p167
      %p174 = scmp.eq.s32.totalorder %s18, 3
      %p175 = por %p173, %p174
      %p176 = scmp.ne.s32.totalorder %s168, %s171
      %p177 = scmp.eq.s32.totalorder %s18, 0
      %p178 = por %p176, %p177
      %p179 = scmp.ne.s32.totalorder %s168, %s171
      %p180 = scmp.eq.s32.totalorder %s23, 3
      %p181 = por %p179, %p180
      %p182 = scmp.ne.s32.totalorder %s171, %s172
      %p183 = scmp.eq.s32.totalorder %s23, 0
      %p184 = por %p182, %p183
      %p185 = scmp.ne.s32.totalorder %s171, %s172
      %p186 = scmp.eq.s32.totalorder %s24, 3
      %p187 = por %p185, %p186
      %p189 = scmp.ne.s32.totalorder %s172, %s188
      %p190 = scmp.eq.s32.totalorder %s24, 0
      %p191 = por %p189, %p190
      %p192 = scmp.le.s32.totalorder 1, %s18
      %p193 = scmp.lt.s32.totalorder %s18, 5
      %p194 = pnand %p192, %p193
      %p195 = pneg %p194
      // Predicated region
      $region9: #{tpu_custom_call.1} parent=5 // pred_check
        _
      $region10: #{tpu_custom_call.1} parent=5 // pred_check_branch
        %197 = sbr.rel (%p194) target = $region12
      $region11: #{tpu_custom_call.1} parent=5 // pred_region
        %s198 = ssub.s32 %s18, 1
        // Predicated region
        $region13: #{tpu_custom_call.1} parent=11 // pred_check
          %p199 = pneg %p79
        $region14: #{tpu_custom_call.1} parent=11 // pred_check_branch
          %201 = sbr.rel (%p199) target = $region16
        $region15: #{tpu_custom_call.1} parent=11 // pred_region
          _
        $region16: #{tpu_custom_call.1} parent=11 // pred_fallthru
          _
        // Predicated region
        $region17: #{tpu_custom_call.1} parent=11 // pred_check
          %p202 = pneg %p100
        $region18: #{tpu_custom_call.1} parent=11 // pred_check_branch
          %204 = sbr.rel (%p202) target = $region20
        $region19: #{tpu_custom_call.1} parent=11 // pred_region
          _
        $region20: #{tpu_custom_call.1} parent=11 // pred_fallthru
          _
      $region12: #{tpu_custom_call.1} parent=5 // pred_fallthru
        _
      %p205 = scmp.lt.s32.totalorder %s18, 4
      // Predicated region
      $region21: #{tpu_custom_call.1} parent=5 // pred_check
        %p206 = pneg %p205
      $region22: #{tpu_custom_call.1} parent=5 // pred_check_branch
        %208 = sbr.rel (%p206) target = $region24
      $region23: #{tpu_custom_call.1} parent=5 // pred_region
        // Predicated region
        $region25: #{tpu_custom_call.1} parent=23 // pred_check
          %p209 = pneg %p52
        $region26: #{tpu_custom_call.1} parent=23 // pred_check_branch
          %211 = sbr.rel (%p209) target = $region28
        $region27: #{tpu_custom_call.1} parent=23 // pred_region
          %p212 = scmp.lt.s32.totalorder %s25, 1
          %s213 = scalar_select %p212, %s25, 1
          %p214 = scmp.lt.s32.totalorder %s26, 1
          %s215 = scalar_select %p214, %s26, 1
          %s216 = smul.addr %s213, 2
          %s217 = sadd.s32 %s215, %s216
          %s218 = smul.addr %s217, 4
          %s219 = scalar_lea.vmem %s0, %s218
        $region28: #{tpu_custom_call.1} parent=23 // pred_fallthru
          _
      $region24: #{tpu_custom_call.1} parent=5 // pred_fallthru
        _
      %p220 = scmp.le.s32.totalorder 1, %s18
      %p221 = scmp.lt.s32.totalorder %s18, 5
      %p222 = pnand %p220, %p221
      %p223 = pneg %p222
      // Predicated region
      $region29: #{tpu_custom_call.1} parent=5 // pred_check
        _
      $region30: #{tpu_custom_call.1} parent=5 // pred_check_branch
        %225 = sbr.rel (%p222) target = $region32
      $region31: #{tpu_custom_call.1} parent=5 // pred_region
        %s226 = ssub.s32 %s18, 1
        %p227 = scmp.lt.s32.totalorder %s27, 1
        %s228 = scalar_select %p227, %s27, 1
        %p229 = scmp.lt.s32.totalorder %s28, 1
        %s230 = scalar_select %p229, %s28, 1
        %s231 = smul.addr %s228, 2
        %s232 = sadd.s32 %s230, %s231
        %s233 = smul.addr %s232, 4
        %s234 = scalar_lea.vmem %s0, %s233
        %p235 = pneg %p58
        %p236 = pneg %p55
        %p237 = pneg %p79
        %p238 = pneg %p76
        %p239 = pneg %p100
        %p240 = pneg %p97
        %p241 = pneg %p128
        %p242 = pneg %p125
        %s243 = sand.u32 %s115, 1
        %s244 = scalar_lea.sflag [#allocation3], %s243
        %s245 = sand.u32 %s115, 1
        %s246 = smul.addr %s245, 4
        %s247 = scalar_lea.vmem [#allocation2], %s246
        %p248 = pneg %p156
        %p249 = pneg %p153
        %s250 = smul.u32 16, %s28
        %p251 = scmp.lt.s32.totalorder %s27, 1
        %s252 = scalar_select %p251, %s27, 1
        %p253 = scmp.lt.s32.totalorder %s250, 31
        %s254 = scalar_select %p253, %s250, 31
        %s255 = smul.addr %s252, 32
        %s256 = sadd.s32 %s254, %s255
        %s257 = smul.addr %s256, 4
        %s258 = scalar_lea.vmem %s4, %s257
        %p259 = pneg %p184
        %p260 = pneg %p181
        %s261 = sand.u32 %s171, 1
        %s262 = scalar_lea.sflag [#allocation5], %s261
        %s263 = sand.u32 %s171, 1
        %s264 = smul.addr %s263, 4
        %s265 = scalar_lea.vmem [#allocation4], %s264
        %p266 = scmp.lt.s32.totalorder %s27, 1
        %s267 = scalar_select %p266, %s27, 1
        %p268 = scmp.lt.s32.totalorder %s28, 1
        %s269 = scalar_select %p268, %s28, 1
        %s270 = smul.addr %s267, 2
        %s271 = sadd.s32 %s269, %s270
        %s272 = smul.addr %s271, 4
        %s273 = scalar_lea.vmem %s0, %s272
        %s274 = smul.u32 16, %s28
        %p275 = scmp.lt.s32.totalorder %s27, 1
        %s276 = scalar_select %p275, %s27, 1
        %p277 = scmp.lt.s32.totalorder %s274, 31
        %s278 = scalar_select %p277, %s274, 31
        %s279 = smul.addr %s276, 32
        %s280 = sadd.s32 %s278, %s279
        %s281 = smul.addr %s280, 4
        %s282 = scalar_lea.vmem %s4, %s281
        %s283 = smul.u32 16, %s28
        %v285 = vld [vmem:[%s273] sm:$0xf]
        %v286 = vld [vmem:[%s1] sm:$0xf]
        %v287 = vld [vmem:[%s1 + $0x4] sm:$0xf]
        %v288 = vld [vmem:[%s1 + $0x8] sm:$0xf]
        %v289 = vld [vmem:[%s2] sm:$0xff]
        %v290 = vld [vmem:[%s2 + $0x8] sm:$0xff]
        %v291 = vld [vmem:[%s2 + $0x10] sm:$0xff]
        %293 = vset.pattern.permute.xlu0 0
        %294 = vperm.xlu0 %293, %v289
        %v295 = vpop.permute.xlu0 %294
        %298 = vset.pattern.permute.xlu0 0
        %299 = vperm.xlu0 %298, %v290
        %v300 = vpop.permute.xlu0 %299
        %303 = vset.pattern.permute.xlu0 0
        %304 = vperm.xlu0 %303, %v291
        %v305 = vpop.permute.xlu0 %304
        %v310 = vunpack.c.l.b16 %v286
        %v311 = vunpack.c.l.b16 %v287
        %v312 = vunpack.c.l.b16 %v288
        %v313 = vpack.c.b16 %v311, %v310
        %v314 = vpack.c.b16 %v312, %v312
        %vm315 = vcmask 64512
        %v317 = vsel %vm315, %v313, 0
        %v320 = vsel %vm315, %v314, 0
        %vm322 = vcmask 1043456
        %v324 = vsel %vm322, %v285, 0
        %326 = vmatpush.bf16.msra.mxu0 0
        %327 = vmatpush.bf16.msra.mxu0 0
        %328 = vmatpush.bf16.msra.mxu0 0
        %329 = vmatpush.bf16.msra.mxu0 0
        %330 = vmatpush.bf16.msra.mxu0 0
        %331 = vmatpush.bf16.msra.mxu0 0
        %332 = vmatpush.bf16.msra.mxu0 0
        %333 = vmatpush.bf16.msra.mxu0 %v324
        %334 = vmatmul.bf16.gmra.mxu0 %v317
        %v335 = vpop.f32.mrf.mxu0
        %v336 = vadd.f32 %v295, %v335
        %v337 = vpop.f32.mrf.mxu0
        %v338 = vadd.f32 %v300, %v337
        %339 = vmatmul.bf16.gmra.mxu0 %v320
        %v340 = vpop.f32.mrf.mxu0
        %v341 = vadd.f32 %v305, %v340
        %v342 = vpop.f32.mrf.mxu0
        %343 = vdwg.mxu0
        %v344 = vpack.c.bf16 %v336, %v336
        %345 = vst [vmem:[%s247] sm:$0xf] %v344
        %346 = vxpose.xlu0.b32.start [1/16] %v338, 128
        %347 = vxpose.xlu0.b32.cont [2/16] 0.0, 128
        %348 = vxpose.xlu0.b32.cont [3/16] 0.0, 128
        %349 = vxpose.xlu0.b32.cont [4/16] 0.0, 128
        %350 = vxpose.xlu0.b32.cont [5/16] 0.0, 128
        %351 = vxpose.xlu0.b32.cont [6/16] 0.0, 128
        %352 = vxpose.xlu0.b32.cont [7/16] 0.0, 128
        %353 = vxpose.xlu0.b32.cont [8/16] 0.0, 128
        %354 = vxpose.xlu0.b32.cont [9/16] 0.0, 128
        %355 = vxpose.xlu0.b32.cont [10/16] 0.0, 128
        %356 = vxpose.xlu0.b32.cont [11/16] 0.0, 128
        %357 = vxpose.xlu0.b32.cont [12/16] 0.0, 128
        %358 = vxpose.xlu0.b32.cont [13/16] 0.0, 128
        %359 = vxpose.xlu0.b32.cont [14/16] 0.0, 128
        %360 = vxpose.xlu0.b32.cont [15/16] 0.0, 128
        %361 = vxpose.xlu0.b32.end [16/16] 0.0, 128
        %v362 = vpop.trf.xlu0
        %v363 = vpop.trf.xlu0
        %v364 = vpop.trf.xlu0
        %v365 = vpop.trf.xlu0
        %v366 = vpop.trf.xlu0
        %v367 = vpop.trf.xlu0
        %v368 = vpop.trf.xlu0
        %v369 = vpop.trf.xlu0
        %v370 = vpop.trf.xlu0
        %v371 = vpop.trf.xlu0
        %v372 = vpop.trf.xlu0
        %v373 = vpop.trf.xlu0
        %v374 = vpop.trf.xlu0
        %v375 = vpop.trf.xlu0
        %v376 = vpop.trf.xlu0
        %v377 = vpop.trf.xlu0
        %v378 = vpack.c.bf16 %v362, %v362
        %v379 = vpack.c.bf16 %v363, %v363
        %v380 = vpack.c.bf16 %v364, %v364
        %v381 = vpack.c.bf16 %v365, %v365
        %v382 = vpack.c.bf16 %v366, %v366
        %v383 = vpack.c.bf16 %v367, %v367
        %v384 = vpack.c.bf16 %v368, %v368
        %v385 = vpack.c.bf16 %v369, %v369
        %v386 = vpack.c.bf16 %v370, %v370
        %v387 = vpack.c.bf16 %v371, %v371
        %v388 = vpack.c.bf16 %v372, %v372
        %v389 = vpack.c.bf16 %v373, %v373
        %v390 = vpack.c.bf16 %v374, %v374
        %v391 = vpack.c.bf16 %v375, %v375
        %v392 = vpack.c.bf16 %v376, %v376
        %v393 = vpack.c.bf16 %v377, %v377
        %vm394 = vcmask 60416
        %395 = vst.msk [vmem:[%s282] sm:$0xf] %vm394, %v378
        %396 = vst.msk [vmem:[%s282 + $0x4] sm:$0xf] %vm394, %v379
        %397 = vst.msk [vmem:[%s282 + $0x8] sm:$0xf] %vm394, %v380
        %398 = vst.msk [vmem:[%s282 + $0xc] sm:$0xf] %vm394, %v381
        %399 = vst.msk [vmem:[%s282 + $0x10] sm:$0xf] %vm394, %v382
        %400 = vst.msk [vmem:[%s282 + $0x14] sm:$0xf] %vm394, %v383
        %401 = vst.msk [vmem:[%s282 + $0x18] sm:$0xf] %vm394, %v384
        %402 = vst.msk [vmem:[%s282 + $0x1c] sm:$0xf] %vm394, %v385
        %403 = vst.msk [vmem:[%s282 + $0x20] sm:$0xf] %vm394, %v386
        %404 = vst.msk [vmem:[%s282 + $0x24] sm:$0xf] %vm394, %v387
        %405 = vst.msk [vmem:[%s282 + $0x28] sm:$0xf] %vm394, %v388
        %406 = vst.msk [vmem:[%s282 + $0x2c] sm:$0xf] %vm394, %v389
        %407 = vst.msk [vmem:[%s282 + $0x30] sm:$0xf] %vm394, %v390
        %408 = vst.msk [vmem:[%s282 + $0x34] sm:$0xf] %vm394, %v391
        %409 = vst.msk [vmem:[%s282 + $0x38] sm:$0xf] %vm394, %v392
        %410 = vst.msk [vmem:[%s282 + $0x3c] sm:$0xf] %vm394, %v393
        %v411 = vpack.c.bf16 %v341, %v341
        %412 = vst [vmem:[%s265] sm:$0xf] %v411
        %s413 = sand.u32 %s115, 1
        %s414 = scalar_lea.sflag [#allocation3], %s413
        %s415 = sand.u32 %s115, 1
        %s416 = smul.addr %s415, 4
        %s417 = scalar_lea.vmem [#allocation2], %s416
        %s418 = smul.u32 16, %s28
        %p419 = scmp.lt.s32.totalorder %s27, 1
        %s420 = scalar_select %p419, %s27, 1
        %p421 = scmp.lt.s32.totalorder %s418, 31
        %s422 = scalar_select %p421, %s418, 31
        %s423 = smul.addr %s420, 32
        %s424 = sadd.s32 %s422, %s423
        %s425 = smul.addr %s424, 4
        %s426 = scalar_lea.vmem %s4, %s425
        %s427 = sand.u32 %s171, 1
        %s428 = scalar_lea.sflag [#allocation5], %s427
        %s429 = sand.u32 %s171, 1
        %s430 = smul.addr %s429, 4
        %s431 = scalar_lea.vmem [#allocation4], %s430
        // Predicated region
        $region33: #{tpu_custom_call.1} parent=31 // pred_check
          %p432 = pneg %p125
        $region34: #{tpu_custom_call.1} parent=31 // pred_check_branch
          %434 = sbr.rel (%p432) target = $region36
        $region35: #{tpu_custom_call.1} parent=31 // pred_region
          %436 = vsyncadd %s414, 0
          %s437 = smul.addr %s27, 2
          %s438 = sadd.s32 %s28, %s437
          %s439 = smul.addr %s438, 4
          %s440 = scalar_lea.hbm %s3, %s439
          %s442 = sshll.u32 %s417, 4
          %s443 = int_to_ptr.vmem [resolvable:$true] %s442
          %s444 = sshll.u32 %s440, 4
          %s445 = int_to_ptr.hbm [resolvable:$true] %s444
          %447 = dma.vmem_to_hbm [thread:$0]  %s443, 64, %s445, %s414
        $region36: #{tpu_custom_call.1} parent=31 // pred_fallthru
          _
        // Predicated region
        $region37: #{tpu_custom_call.1} parent=31 // pred_check
          %p448 = pneg %p153
        $region38: #{tpu_custom_call.1} parent=31 // pred_check_branch
          %450 = sbr.rel (%p448) target = $region40
        $region39: #{tpu_custom_call.1} parent=31 // pred_region
          %s451 = smul.u32 16, %s28
        $region40: #{tpu_custom_call.1} parent=31 // pred_fallthru
          _
        // Predicated region
        $region41: #{tpu_custom_call.1} parent=31 // pred_check
          %p452 = pneg %p181
        $region42: #{tpu_custom_call.1} parent=31 // pred_check_branch
          %454 = sbr.rel (%p452) target = $region44
        $region43: #{tpu_custom_call.1} parent=31 // pred_region
          %456 = vsyncadd %s428, 0
          %s457 = smul.addr %s27, 2
          %s458 = sadd.s32 %s28, %s457
          %s459 = smul.addr %s458, 4
          %s460 = scalar_lea.hbm %s5, %s459
          %s462 = sshll.u32 %s431, 4
          %s463 = int_to_ptr.vmem [resolvable:$true] %s462
          %s464 = sshll.u32 %s460, 4
          %s465 = int_to_ptr.hbm [resolvable:$true] %s464
          %467 = dma.vmem_to_hbm [thread:$0]  %s463, 64, %s465, %s428
        $region44: #{tpu_custom_call.1} parent=31 // pred_fallthru
          _
      $region32: #{tpu_custom_call.1} parent=5 // pred_fallthru
        _
      %p468 = scmp.le.s32.totalorder 2, %s18
      // Predicated region
      $region45: #{tpu_custom_call.1} parent=5 // pred_check
        %p469 = pneg %p468
      $region46: #{tpu_custom_call.1} parent=5 // pred_check_branch
        %471 = sbr.rel (%p469) target = $region48
      $region47: #{tpu_custom_call.1} parent=5 // pred_region
        %s472 = ssub.s32 %s18, 2
        // Predicated region
        $region49: #{tpu_custom_call.1} parent=47 // pred_check
          %p473 = pneg %p131
        $region50: #{tpu_custom_call.1} parent=47 // pred_check_branch
          %475 = sbr.rel (%p473) target = $region52
        $region51: #{tpu_custom_call.1} parent=47 // pred_region
          %s476 = sand.u32 %s116, 1
          %s477 = scalar_lea.sflag [#allocation3], %s476
          %s478 = sand.u32 %s116, 1
          %s479 = smul.addr %s478, 4
          %s480 = scalar_lea.vmem [#allocation2], %s479
          %482 = dma.done %s477, 64
        $region52: #{tpu_custom_call.1} parent=47 // pred_fallthru
          _
        // Predicated region
        $region53: #{tpu_custom_call.1} parent=47 // pred_check
          %p483 = pneg %p159
        $region54: #{tpu_custom_call.1} parent=47 // pred_check_branch
          %485 = sbr.rel (%p483) target = $region56
        $region55: #{tpu_custom_call.1} parent=47 // pred_region
          %s486 = smul.u32 16, %s30
          %p487 = scmp.lt.s32.totalorder %s29, 1
          %s488 = scalar_select %p487, %s29, 1
          %p489 = scmp.lt.s32.totalorder %s486, 31
          %s490 = scalar_select %p489, %s486, 31
          %s491 = smul.addr %s488, 32
          %s492 = sadd.s32 %s490, %s491
          %s493 = smul.addr %s492, 4
          %s494 = scalar_lea.vmem %s4, %s493
        $region56: #{tpu_custom_call.1} parent=47 // pred_fallthru
          _
        // Predicated region
        $region57: #{tpu_custom_call.1} parent=47 // pred_check
          %p495 = pneg %p187
        $region58: #{tpu_custom_call.1} parent=47 // pred_check_branch
          %497 = sbr.rel (%p495) target = $region60
        $region59: #{tpu_custom_call.1} parent=47 // pred_region
          %s498 = sand.u32 %s172, 1
          %s499 = scalar_lea.sflag [#allocation5], %s498
          %s500 = sand.u32 %s172, 1
          %s501 = smul.addr %s500, 4
          %s502 = scalar_lea.vmem [#allocation4], %s501
          %504 = dma.done %s499, 64
        $region60: #{tpu_custom_call.1} parent=47 // pred_fallthru
          _
      $region48: #{tpu_custom_call.1} parent=5 // pred_fallthru
        _
    $region6: #{tpu_custom_call.1} parent=1 // loop_footer
      %s22 = sadd.s32 1, %s18
    $region7: #{tpu_custom_call.1} parent=1 // loop_footer_branch
      %17 = sbr.rel target = $region3
    $region8: #{tpu_custom_call.1} parent=1 // loop_exit
      _
    %505 = vsyncpa [#allocation3], 1
    %s506 = scalar_lea.sflag [#allocation3], 1
    %507 = vsyncpa %s506, 1
    %508 = vsyncpa [#allocation5], 1
    %s509 = scalar_lea.sflag [#allocation5], 1
    %510 = vsyncpa %s509, 1

</llo_original>
